<compile_context>
chip_gen: v5e
topology: v5e:2x2
jax: 0.10.0
libtpu: 0.0.40
codegen_flags: <defaults>
</compile_context>

<pallas_src>
import functools

import jax
import jax.numpy as jnp
from jax import lax
from jax.experimental import pallas as pl
from jax.experimental.pallas import tpu as pltpu

LANES = 128
SUBLANES = 16                      # native bf16 tile; f32 = 2 stacked (8,128)
GROUP = SUBLANES * LANES           # 2048 elements per "group"
CHUNK_GROUPS = 4                   # inner-loop chunk: (4,16,128) = 8 f32 vregs
PAD_LOGIT = 1.0e4                  # with target=1 the focal loss is exactly 0.0


def _round_up(x, m):
    return ((x + m - 1) // m) * m


def _focal_loss_kernel(x_ref, t_ref, out_ref, acc_ref, *,
                       alpha, gamma, beta, inner_chunks, steps, bg,
                       valid_groups, need_group_mask):
    p = pl.program_id(0)
    i = pl.program_id(1)

    @pl.when(i == 0)
    def _():
        acc_ref[...] = jnp.zeros_like(acc_ref)

    block_base = (p * steps + i) * bg        # first (unclamped) group of block

    @pl.loop(0, inner_chunks)
    def _(c):
        g0 = pl.multiple_of(c * CHUNK_GROUPS, CHUNK_GROUPS)
        x = x_ref[pl.ds(g0, CHUNK_GROUPS), :, :].astype(jnp.float32)
        t = t_ref[pl.ds(g0, CHUNK_GROUPS), :, :].astype(jnp.float32)

        # Numerically-stable BCE-with-logits and sigmoid sharing one exp()
        # and one (approximate, EUP-slot) reciprocal.
        e = jnp.exp(-jnp.abs(x))                              # EUP
        bce = jnp.maximum(x, 0.0) - x * t + jnp.log1p(e)
        inv = pl.reciprocal(1.0 + e, approx=True)             # ~= 1/(1+e), EUP

        pos_x = x >= 0.0
        pos_t = t == 1.0      # strict {0,1} targets, as in the PyTorch module
        # 1 - pt == sigmoid(-x) if t==1 else sigmoid(x); both branches reuse
        # (e, inv), so there is no 1-probs cancellation and no extra selects.
        one_minus_pt = jnp.where(pos_x == pos_t, e * inv, inv)

        g = float(gamma)
        if g == 2.0:                                          # default: pure VPU
            fpow = one_minus_pt * one_minus_pt
        elif g == float(int(g)) and g >= 0.0:
            fpow = one_minus_pt ** int(g)                     # integer_pow -> muls
        else:
            fpow = one_minus_pt ** g                          # general pow
        if 0.0 <= alpha <= 1.0:
            w = jnp.where(pos_t, alpha * beta, (1.0 - alpha) * beta)
            loss = w * fpow * bce
        elif beta != 1.0:
            loss = (beta * fpow) * bce
        else:
            loss = fpow * bce

        if need_group_mask:
            # Mask groups that belong to the grid-edge overhang (or to the
            # clamped duplicate block of an odd 2-partial split).
            gid = block_base + g0 + lax.broadcasted_iota(
                jnp.int32, (CHUNK_GROUPS, SUBLANES, LANES), 0)
            loss = jnp.where(gid < valid_groups, loss, 0.0)

        acc_ref[...] += jnp.sum(loss, axis=0, keepdims=True)  # VPU-only adds

    @pl.when(i == pl.num_programs(1) - 1)
    def _():
        out_ref[...] = acc_ref[...]


def focal_loss(inputs, targets, *, alpha=0.25, gamma=2.0, beta=1.0,
               reduction="mean", block_groups=512):
    """Pallas focal loss (binary, with logits).

    inputs/targets: same shape (any dtype; cast to f32 in-kernel -- bf16
    logits/targets are supported and halve HBM traffic).  Targets are
    expected to be hard {0,1} labels (the `t == 1` select matches the
    PyTorch module exactly).  block_groups is in units of 2048-element
    groups; the default streams ~1M elements (~6 MiB) per grid step.
    """
    if inputs.shape != targets.shape:
        raise ValueError("inputs and targets must have the same shape")
    if reduction not in ("mean", "sum"):
        # TODO(synk): 'none' reduction (full elementwise output) not implemented.
        raise NotImplementedError("only 'mean' and 'sum' reductions supported")

    n_elems = inputs.size
    assert n_elems > 0

    groups_valid = pl.cdiv(n_elems, GROUP)
    groups_padded = _round_up(groups_valid, CHUNK_GROUPS)    # slab 1st dim

    bg = max(CHUNK_GROUPS, (int(block_groups) // CHUNK_GROUPS) * CHUNK_GROUPS)
    bg = min(bg, groups_padded)                              # multiple of CHUNK
    n_blocks = pl.cdiv(groups_padded, bg)
    num_partials = 2 if n_blocks >= 2 else 1                 # feeds both v7x TCs
    steps = pl.cdiv(n_blocks, num_partials)
    # Group masking is needed if the last block overhangs the slab, or if the
    # 2-partial split revisits a clamped duplicate of the last block.
    need_group_mask = (groups_padded % bg != 0) or (num_partials * steps != n_blocks)

    # Only the sub-block tail is padded (< CHUNK_GROUPS*GROUP elements); the
    # pad fuses with the reshape and uses (logit=+PAD_LOGIT, target=1), for
    # which the focal loss is exactly 0 -> no element-level masking needed.
    pad = groups_padded * GROUP - n_elems
    x = inputs.reshape(-1)
    t = targets.reshape(-1)          # keep caller dtype; cast to f32 in-kernel
    if pad:
        x = jnp.pad(x, (0, pad), constant_values=PAD_LOGIT)
        t = jnp.pad(t, (0, pad), constant_values=1)
    x = x.reshape(groups_padded, SUBLANES, LANES)
    t = t.reshape(groups_padded, SUBLANES, LANES)

    kernel = functools.partial(
        _focal_loss_kernel, alpha=float(alpha), gamma=float(gamma),
        beta=float(beta), inner_chunks=bg // CHUNK_GROUPS, steps=steps, bg=bg,
        valid_groups=groups_padded, need_group_mask=need_group_mask)

    last_block = n_blocks - 1

    def block_map(p, i):
        # Clamp so a possible overshoot step (odd n_blocks with 2 partials)
        # re-reads the last in-bounds block; the kernel masks it out.
        return (jnp.minimum(p * steps + i, last_block), 0, 0)

    block = pl.BlockSpec((bg, SUBLANES, LANES), block_map)

    # Double-buffered streaming footprint; raise the scoped-VMEM cap (v5e's
    # default is 16 MiB) while staying inside every generation's physical VMEM.
    block_bytes = bg * GROUP * (x.dtype.itemsize + t.dtype.itemsize)
    vmem_limit = max(32 << 20, int(2.5 * block_bytes) + (2 << 20))

    partials = pl.pallas_call(
        kernel,
        out_shape=jax.ShapeDtypeStruct((num_partials, SUBLANES, LANES),
                                       jnp.float32),
        grid_spec=pltpu.PrefetchScalarGridSpec(
            num_scalar_prefetch=0,
            grid=(num_partials, steps),
            in_specs=[block, block],
            out_specs=pl.BlockSpec((1, SUBLANES, LANES),
                                   lambda p, i: (p, 0, 0)),
            scratch_shapes=[pltpu.VMEM((1, SUBLANES, LANES), jnp.float32)],
        ),
        compiler_params=pltpu.CompilerParams(
            # NOTE: on v7x, pltpu.CORE_PARALLEL on axis 0 would guarantee the
            # 2-TensorCore split; plain "parallel" is kept for portability.
            dimension_semantics=("parallel", "arbitrary"),
            vmem_limit_bytes=vmem_limit),
    )(x, t)

    total = jnp.sum(partials)        # tiny (num_partials, 16, 128) reduce
    if reduction == "mean":
        return total / jnp.float32(n_elems)
    return total


def _focal_loss_ref(inputs, targets, alpha=0.25, gamma=2.0, beta=1.0):
    """Pure-JAX elementwise reference (mirrors the PyTorch module)."""
    x = inputs.astype(jnp.float32)
    t = targets.astype(jnp.float32)
    probs = jax.nn.sigmoid(x)
    bce = jnp.maximum(x, 0.0) - x * t + jnp.log1p(jnp.exp(-jnp.abs(x)))
    pt = jnp.where(t == 1.0, probs, 1.0 - probs)
    fw = beta * (1.0 - pt) ** gamma
    if 0.0 <= alpha <= 1.0:
        fw = jnp.where(t == 1.0, alpha, 1.0 - alpha) * fw
    return fw * bce


if __name__ == "__main__":
    key = jax.random.PRNGKey(0)
    k1, k2, k3, k4 = jax.random.split(key, 4)

    # Tolerance budget: the kernel uses the EUP approximate reciprocal for
    # the sigmoid denominator; everything else is exact f32 math, so ~1e-3
    # relative slack on the reduced loss scalar is expected.
    RTOL, ATOL = 1e-2, 1e-6

    # Dense pixel-wise binary classification: NCHW logits + {0,1} targets
    # (targets kept in bf16 -> half the target HBM traffic).
    x1 = jax.random.normal(k1, (2, 4, 16, 16), dtype=jnp.float32)
    t1 = (jax.random.uniform(k2, (2, 4, 16, 16)) > 0.7).astype(jnp.bfloat16)

    loss_fn = jax.jit(functools.partial(focal_loss, alpha=0.25, gamma=2.0,
                                        beta=1.0, reduction="mean"))
    loss = jax.block_until_ready(loss_fn(x1, t1))
    ref = jnp.mean(_focal_loss_ref(x1, t1))
    assert jnp.allclose(loss, ref, rtol=RTOL, atol=ATOL), (loss, ref)

    # Ragged size + small blocks: exercises the zero-loss tail pad, the
    # in-kernel grid-edge group mask and the 2-partial split, plus 'sum'.
    x2 = jax.random.normal(k3, (2, 3, 50, 70), dtype=jnp.float32)
    t2 = (jax.random.uniform(k4, (2, 3, 50, 70)) > 0.5).astype(jnp.bfloat16)
    loss2 = jax.block_until_ready(
        focal_loss(x2, t2, alpha=0.25, gamma=2.0, beta=1.0,
                   reduction="sum", block_groups=8))
    ref2 = jnp.sum(_focal_loss_ref(x2, t2))
    assert jnp.allclose(loss2, ref2, rtol=RTOL, atol=ATOL), (loss2, ref2)

    # Odd block count: exercises the clamped index_map + fully-masked
    # duplicate-block path ('mean' reduction).
    loss3 = jax.block_until_ready(
        focal_loss(x2, t2, alpha=0.25, gamma=2.0, beta=1.0,
                   reduction="mean", block_groups=4))
    ref3 = jnp.mean(_focal_loss_ref(x2, t2))
    assert jnp.allclose(loss3, ref3, rtol=RTOL, atol=ATOL), (loss3, ref3)

    print("KERNEL_OK")
</pallas_src>

<mosaic_0001>
module attributes {stable_mosaic.version = 11 : i64} {
  func.func @_focal_loss_kernel(%arg0: i32, %arg1: i32, %arg2: memref<4x16x128xf32, #tpu.memory_space<vmem>>, %arg3: memref<4x16x128xbf16, #tpu.memory_space<vmem>>, %arg4: memref<1x16x128xf32, #tpu.memory_space<vmem>>, %arg5: memref<1x16x128xf32, #tpu.memory_space<vmem>>) attributes {dimension_semantics = [#tpu.dimension_semantics<parallel>, #tpu.dimension_semantics<arbitrary>], iteration_bounds = array<i64: 1, 1>, scalar_prefetch = 0 : i64, scratch_operands = 1 : i64, tpu.core_type = #tpu.core_type<tc>, window_params = [{transform_indices = @transform_0, window_bounds = array<i64: 4, 16, 128>}, {transform_indices = @transform_1, window_bounds = array<i64: 4, 16, 128>}, {transform_indices = @transform_2, window_bounds = array<i64: 1, 16, 128>}]} {
    %c0_i32 = arith.constant 0 : i32
    %0 = arith.cmpi eq, %arg1, %c0_i32 : i32
    %1 = arith.extui %0 : i1 to i32
    %c0_i32_0 = arith.constant 0 : i32
    %2 = arith.cmpi ne, %1, %c0_i32_0 : i32
    scf.if %2 {
      %cst_23 = arith.constant 0.000000e+00 : f32
      %47 = vector.broadcast %cst_23 : f32 to vector<1x16x128xf32>
      %c0_24 = arith.constant 0 : index
      %c0_25 = arith.constant 0 : index
      %c0_26 = arith.constant 0 : index
      %48 = vector.load %arg5[%c0_24, %c0_25, %c0_26] : memref<1x16x128xf32, #tpu.memory_space<vmem>>, vector<1x16x128xf32>
      tpu.vector_store %arg5[%c0_24, %c0_25, %c0_26], %47 {strides = array<i32>} : memref<1x16x128xf32, #tpu.memory_space<vmem>>, vector<1x16x128xf32>,
    } else {
    }
    %c0_i32_1 = arith.constant 0 : i32
    %c1_i32 = arith.constant 1 : i32
    %3 = arith.muli %c0_i32_1, %c1_i32 : i32
    %c0_i32_2 = arith.constant 0 : i32
    %4 = arith.addi %c0_i32_2, %3 : i32
    %c4_i32 = arith.constant 4 : i32
    %5 = arith.muli %4, %c4_i32 : i32
    %6 = tpu.assume_multiple %5, 4 : i32
    %7 = arith.index_cast %6 : i32 to index
    %c0 = arith.constant 0 : index
    %c0_3 = arith.constant 0 : index
    %8 = vector.load %arg2[%7, %c0, %c0_3] : memref<4x16x128xf32, #tpu.memory_space<vmem>>, vector<4x16x128xf32>
    %9 = arith.index_cast %6 : i32 to index
    %c0_4 = arith.constant 0 : index
    %c0_5 = arith.constant 0 : index
    %10 = vector.load %arg3[%9, %c0_4, %c0_5] : memref<4x16x128xbf16, #tpu.memory_space<vmem>>, vector<4x16x128xbf16>
    %11 = arith.extf %10 : vector<4x16x128xbf16> to vector<4x16x128xf32>
    %12 = math.absf %8 : vector<4x16x128xf32>
    %cst = arith.constant 0.000000e+00 : f32
    %13 = vector.broadcast %cst : f32 to vector<4x16x128xf32>
    %14 = arith.subf %13, %12 : vector<4x16x128xf32>
    %15 = math.exp %14 : vector<4x16x128xf32>
    %cst_6 = arith.constant 0.000000e+00 : f32
    %16 = vector.broadcast %cst_6 : f32 to vector<4x16x128xf32>
    %17 = arith.maximumf %8, %16 : vector<4x16x128xf32>
    %18 = arith.mulf %8, %11 : vector<4x16x128xf32>
    %19 = arith.subf %17, %18 : vector<4x16x128xf32>
    %20 = math.log1p %15 : vector<4x16x128xf32>
    %21 = arith.addf %19, %20 : vector<4x16x128xf32>
    %cst_7 = arith.constant 1.000000e+00 : f32
    %22 = vector.broadcast %cst_7 : f32 to vector<4x16x128xf32>
    %23 = arith.addf %22, %15 : vector<4x16x128xf32>
    %24 = tpu.reciprocal %23 {approx = true} : vector<4x16x128xf32> -> vector<4x16x128xf32>
    %cst_8 = arith.constant 0.000000e+00 : f32
    %25 = vector.broadcast %cst_8 : f32 to vector<4x16x128xf32>
    %26 = arith.cmpf oge, %8, %25 : vector<4x16x128xf32>
    %cst_9 = arith.constant 1.000000e+00 : f32
    %27 = vector.broadcast %cst_9 : f32 to vector<4x16x128xf32>
    %28 = arith.cmpf oeq, %11, %27 : vector<4x16x128xf32>
    %29 = arith.xori %26, %28 : vector<4x16x128xi1>
    %cst_10 = arith.constant dense<true> : vector<4x16x128xi1>
    %30 = arith.xori %29, %cst_10 : vector<4x16x128xi1>
    %31 = arith.mulf %15, %24 : vector<4x16x128xf32>
    %32 = arith.select %30, %31, %24 : vector<4x16x128xi1>, vector<4x16x128xf32>
    %33 = arith.mulf %32, %32 : vector<4x16x128xf32>
    %cst_11 = arith.constant 2.500000e-01 : f32
    %cst_12 = arith.constant 7.500000e-01 : f32
    %34 = vector.broadcast %cst_11 : f32 to vector<4x16x128xf32>
    %35 = vector.broadcast %cst_12 : f32 to vector<4x16x128xf32>
    %36 = arith.select %28, %34, %35 : vector<4x16x128xi1>, vector<4x16x128xf32>
    %37 = arith.mulf %36, %33 : vector<4x16x128xf32>
    %38 = arith.mulf %37, %21 : vector<4x16x128xf32>
    %c0_13 = arith.constant 0 : index
    %c0_14 = arith.constant 0 : index
    %c0_15 = arith.constant 0 : index
    %39 = vector.load %arg5[%c0_13, %c0_14, %c0_15] : memref<1x16x128xf32, #tpu.memory_space<vmem>>, vector<1x16x128xf32>
    %cst_16 = arith.constant dense<0.000000e+00> : vector<16x128xf32>
    %40 = vector.multi_reduction <add>, %38, %cst_16 [0] : vector<4x16x128xf32> to vector<16x128xf32>
    %41 = vector.shape_cast %40 : vector<16x128xf32> to vector<1x16x128xf32>
    %42 = arith.addf %39, %41 : vector<1x16x128xf32>
    %c0_17 = arith.constant 0 : index
    %c0_18 = arith.constant 0 : index
    %c0_19 = arith.constant 0 : index
    %43 = vector.load %arg5[%c0_17, %c0_18, %c0_19] : memref<1x16x128xf32, #tpu.memory_space<vmem>>, vector<1x16x128xf32>
    tpu.vector_store %arg5[%c0_17, %c0_18, %c0_19], %42 {strides = array<i32>} : memref<1x16x128xf32, #tpu.memory_space<vmem>>, vector<1x16x128xf32>,
    %c1_i32_20 = arith.constant 1 : i32
    %c0_i32_21 = arith.constant 0 : i32
    %44 = arith.cmpi eq, %arg1, %c0_i32_21 : i32
    %45 = arith.extui %44 : i1 to i32
    %c0_i32_22 = arith.constant 0 : i32
    %46 = arith.cmpi ne, %45, %c0_i32_22 : i32
    scf.if %46 {
      %c0_23 = arith.constant 0 : index
      %c0_24 = arith.constant 0 : index
      %c0_25 = arith.constant 0 : index
      %47 = vector.load %arg5[%c0_23, %c0_24, %c0_25] : memref<1x16x128xf32, #tpu.memory_space<vmem>>, vector<1x16x128xf32>
      %c0_26 = arith.constant 0 : index
      %c0_27 = arith.constant 0 : index
      %c0_28 = arith.constant 0 : index
      %48 = vector.load %arg4[%c0_26, %c0_27, %c0_28] : memref<1x16x128xf32, #tpu.memory_space<vmem>>, vector<1x16x128xf32>
      tpu.vector_store %arg4[%c0_26, %c0_27, %c0_28], %47 {strides = array<i32>} : memref<1x16x128xf32, #tpu.memory_space<vmem>>, vector<1x16x128xf32>,
    } else {
    }
    return
  }
  func.func @transform_0(%arg0: i32, %arg1: i32) -> (i32, i32, i32) {
    %c1_i32 = arith.constant 1 : i32
    %0 = arith.muli %arg0, %c1_i32 : i32
    %1 = arith.addi %0, %arg1 : i32
    %c0_i32 = arith.constant 0 : i32
    %2 = arith.minsi %1, %c0_i32 : i32
    %c0_i32_0 = arith.constant 0 : i32
    %c0_i32_1 = arith.constant 0 : i32
    %c0_i32_2 = arith.constant 0 : i32
    return %2, %c0_i32_0, %c0_i32_1 : i32, i32, i32
  }
  func.func @transform_1(%arg0: i32, %arg1: i32) -> (i32, i32, i32) {
    %c1_i32 = arith.constant 1 : i32
    %0 = arith.muli %arg0, %c1_i32 : i32
    %1 = arith.addi %0, %arg1 : i32
    %c0_i32 = arith.constant 0 : i32
    %2 = arith.minsi %1, %c0_i32 : i32
    %c0_i32_0 = arith.constant 0 : i32
    %c0_i32_1 = arith.constant 0 : i32
    %c0_i32_2 = arith.constant 0 : i32
    return %2, %c0_i32_0, %c0_i32_1 : i32, i32, i32
  }
  func.func @transform_2(%arg0: i32, %arg1: i32) -> (i32, i32, i32) {
    %c0_i32 = arith.constant 0 : i32
    %c0_i32_0 = arith.constant 0 : i32
    %c0_i32_1 = arith.constant 0 : i32
    return %arg0, %c0_i32, %c0_i32_0 : i32, i32, i32
  }
}

</mosaic_0001>

<llo_original>
// kernel: focal_loss.1
$region0: #{focal_loss.1}
  #allocation0 [shape = 'u32[]', space=smem, size = 0x4, offset = 0x4, fixed_abs, tag = 'smem constant byte address 0x4 - core index']
  #allocation1 [shape = 'u32[72,128]{1,0:T(1,128)}', space=vmem, size = 0x9000, scoped, tag = 'internal scratch']
  #allocation2 [shape = 'f32[1,16,128]{2,1,0:T(8,128)}', space=vmem, size = 0x2000, scoped, tag = 'scratch operand']
  %s0 = inlined_call_operand.vmem [shape: f32[4,16,128], index: 0, kind: input, shape index: {}]
  %s1 = inlined_call_operand.vmem [shape: bf16[4,16,128], index: 1, kind: input, shape index: {}]
  %s2 = inlined_call_operand.vmem [shape: f32[1,16,128], index: 2, kind: output, shape index: {}]
  %s3 = sld [smem:[#allocation0]]
  $region26: #{focal_loss.1} parent=0
    _
  %s5 = ssub.s32 1, %s3
  %s6 = scalar_select 0, %s5, %s3
  // Predicated region
  $region2: #{focal_loss.1} parent=0 // pred_check
    _
  $region3: #{focal_loss.1} parent=0 // pred_check_branch
    %8 = sbr.rel (0) target = $region5
  $region4: #{focal_loss.1} parent=0 // pred_region
    %s9 = sadd.s32 0, 0
    %p10 = scmp.lt.s32.totalorder %s9, 0
    %s11 = scalar_select %p10, %s9, 0
    %s12 = smul.u32 4, %s11
    %p13 = scmp.lt.s32.totalorder %s12, 3
    %s14 = scalar_select %p13, %s12, 3
    %s15 = smul.addr %s14, 2
    %s16 = smul.addr %s15, 8
    %s17 = scalar_lea.vmem %s0, %s16
    %s18 = sadd.s32 0, 0
    %p19 = scmp.lt.s32.totalorder %s18, 0
    %s20 = scalar_select %p19, %s18, 0
    %s21 = smul.u32 4, %s20
  $region5: #{focal_loss.1} parent=0 // pred_fallthru
    _
  // Predicated region
  $region6: #{focal_loss.1} parent=0 // pred_check
    _
  $region7: #{focal_loss.1} parent=0 // pred_check_branch
    %23 = sbr.rel (0) target = $region9
  $region8: #{focal_loss.1} parent=0 // pred_region
    %s24 = sadd.s32 0, 0
    %p25 = scmp.lt.s32.totalorder %s24, 0
    %s26 = scalar_select %p25, %s24, 0
    %s27 = smul.u32 4, %s26
    %p28 = scmp.lt.s32.totalorder %s27, 3
    %s29 = scalar_select %p28, %s27, 3
    %s30 = smul.addr %s29, 2
    %s31 = smul.addr %s30, 4
    %s32 = scalar_lea.vmem %s1, %s31
    %s33 = sadd.s32 0, 0
    %p34 = scmp.lt.s32.totalorder %s33, 0
    %s35 = scalar_select %p34, %s33, 0
    %s36 = smul.u32 4, %s35
  $region9: #{focal_loss.1} parent=0 // pred_fallthru
    _
  %s37 = sadd.s32 0, 0
  %p38 = scmp.lt.s32.totalorder %s37, 0
  %s39 = scalar_select %p38, %s37, 0
  %s40 = smul.u32 4, %s39
  %p41 = scmp.lt.s32.totalorder %s40, 3
  %s42 = scalar_select %p41, %s40, 3
  %s43 = smul.addr %s42, 2
  %s44 = smul.addr %s43, 8
  %s45 = scalar_lea.vmem %s0, %s44
  %s46 = sadd.s32 0, 0
  %p47 = scmp.lt.s32.totalorder %s46, 0
  %s48 = scalar_select %p47, %s46, 0
  %s49 = smul.u32 4, %s48
  %p50 = scmp.lt.s32.totalorder %s49, 3
  %s51 = scalar_select %p50, %s49, 3
  %s52 = smul.addr %s51, 2
  %s53 = smul.addr %s52, 4
  %s54 = scalar_lea.vmem %s1, %s53
  %s55 = sadd.s32 0, 0
  %p56 = scmp.lt.s32.totalorder %s55, 0
  %s57 = scalar_select %p56, %s55, 0
  %s58 = smul.u32 4, %s57
  %p59 = scmp.lt.s32.totalorder %s58, 3
  %s60 = scalar_select %p59, %s58, 3
  %s61 = smul.addr %s60, 2
  %s62 = smul.addr %s61, 8
  %s63 = scalar_lea.vmem %s0, %s62
  %s64 = sadd.s32 0, 0
  %p65 = scmp.lt.s32.totalorder %s64, 0
  %s66 = scalar_select %p65, %s64, 0
  %s67 = smul.u32 4, %s66
  %s68 = sadd.s32 0, 0
  %p69 = scmp.lt.s32.totalorder %s68, 0
  %s70 = scalar_select %p69, %s68, 0
  %s71 = smul.u32 4, %s70
  %p72 = scmp.lt.s32.totalorder %s71, 3
  %s73 = scalar_select %p72, %s71, 3
  %s74 = smul.addr %s73, 2
  %s75 = smul.addr %s74, 4
  %s76 = scalar_lea.vmem %s1, %s75
  %s77 = sadd.s32 0, 0
  %p78 = scmp.lt.s32.totalorder %s77, 0
  %s79 = scalar_select %p78, %s77, 0
  %s80 = smul.u32 4, %s79
  %p81 = scmp.eq.s32.totalorder 0, 0
  // Predicated region
  $region10: #{focal_loss.1} parent=0 // pred_check
    %p82 = pneg %p81
  $region11: #{focal_loss.1} parent=0 // pred_check_branch
    %84 = sbr.rel (%p82) target = $region13
  $region12: #{focal_loss.1} parent=0 // pred_region
    %85 = vst [vmem:[#allocation2] sm:$0xff] 0.0
    %86 = vst [vmem:[#allocation2 + $0x8] sm:$0xff] 0.0
  $region13: #{focal_loss.1} parent=0 // pred_fallthru
    _
  %s87 = smul.u32 0, 16
  %s88 = scalar_lea.vmem %s63, %s87
  %v89 = vld [vmem:[%s88] sm:$0xff]
  %v90 = vld [vmem:[%s88 + $0x8] sm:$0xff]
  %v91 = vld [vmem:[%s88 + $0x10] sm:$0xff]
  %v92 = vld [vmem:[%s88 + $0x18] sm:$0xff]
  %v93 = vld [vmem:[%s88 + $0x20] sm:$0xff]
  %v94 = vld [vmem:[%s88 + $0x28] sm:$0xff]
  %v95 = vld [vmem:[%s88 + $0x30] sm:$0xff]
  %v96 = vld [vmem:[%s88 + $0x38] sm:$0xff]
  %s97 = smul.u32 0, 2
  %s98 = smul.addr %s97, 4
  %s99 = scalar_lea.vmem %s76, %s98
  %v100 = vld [vmem:[%s99] sm:$0xf]
  %v101 = vld [vmem:[%s99 + $0x4] sm:$0xf]
  %v102 = vld [vmem:[%s99 + $0x8] sm:$0xf]
  %v103 = vld [vmem:[%s99 + $0xc] sm:$0xf]
  %v104 = vld [vmem:[%s99 + $0x10] sm:$0xf]
  %v105 = vld [vmem:[%s99 + $0x14] sm:$0xf]
  %v106 = vld [vmem:[%s99 + $0x18] sm:$0xf]
  %v107 = vld [vmem:[%s99 + $0x1c] sm:$0xf]
  %v108 = vunpack.c.l.bf16 %v100
  %v109 = vunpack.c.l.bf16 %v101
  %v110 = vunpack.c.l.bf16 %v102
  %v111 = vunpack.c.l.bf16 %v103
  %v112 = vunpack.c.l.bf16 %v104
  %v113 = vunpack.c.l.bf16 %v105
  %v114 = vunpack.c.l.bf16 %v106
  %v115 = vunpack.c.l.bf16 %v107
  %v116 = vand.u32 2147483647, %v89
  %v117 = vand.u32 2147483647, %v90
  %v118 = vand.u32 2147483647, %v91
  %v119 = vand.u32 2147483647, %v92
  %v120 = vand.u32 2147483647, %v93
  %v121 = vand.u32 2147483647, %v94
  %v122 = vand.u32 2147483647, %v95
  %v123 = vand.u32 2147483647, %v96
  %v124 = vsub.f32 0.0, %v116
  %v125 = vsub.f32 0.0, %v117
  %v126 = vsub.f32 0.0, %v118
  %v127 = vsub.f32 0.0, %v119
  %v128 = vsub.f32 0.0, %v120
  %v129 = vsub.f32 0.0, %v121
  %v130 = vsub.f32 0.0, %v122
  %v131 = vsub.f32 0.0, %v123
  %v132 = vmul.f32 %v124, 1.442695
  %v133 = vpow.pop %v132
  %v134 = vmul.f32 %v125, 1.442695
  %v135 = vpow.pop %v134
  %v136 = vmul.f32 %v126, 1.442695
  %v137 = vpow.pop %v136
  %v138 = vmul.f32 %v127, 1.442695
  %v139 = vpow.pop %v138
  %v140 = vmul.f32 %v128, 1.442695
  %v141 = vpow.pop %v140
  %v142 = vmul.f32 %v129, 1.442695
  %v143 = vpow.pop %v142
  %v144 = vmul.f32 %v130, 1.442695
  %v145 = vpow.pop %v144
  %v146 = vmul.f32 %v131, 1.442695
  %v147 = vpow.pop %v146
  %v148 = vmax.f32 %v89, 0.0
  %v149 = vmax.f32 %v90, 0.0
  %v150 = vmax.f32 %v91, 0.0
  %v151 = vmax.f32 %v92, 0.0
  %v152 = vmax.f32 %v93, 0.0
  %v153 = vmax.f32 %v94, 0.0
  %v154 = vmax.f32 %v95, 0.0
  %v155 = vmax.f32 %v96, 0.0
  %v156 = vmul.f32 %v89, %v108
  %v157 = vmul.f32 %v90, %v109
  %v158 = vmul.f32 %v91, %v110
  %v159 = vmul.f32 %v92, %v111
  %v160 = vmul.f32 %v93, %v112
  %v161 = vmul.f32 %v94, %v113
  %v162 = vmul.f32 %v95, %v114
  %v163 = vmul.f32 %v96, %v115
  %v164 = vsub.f32 %v148, %v156
  %v165 = vsub.f32 %v149, %v157
  %v166 = vsub.f32 %v150, %v158
  %v167 = vsub.f32 %v151, %v159
  %v168 = vsub.f32 %v152, %v160
  %v169 = vsub.f32 %v153, %v161
  %v170 = vsub.f32 %v154, %v162
  %v171 = vsub.f32 %v155, %v163
  %v172 = vadd.f32 %v133, 1.0
  %v173 = vlog2.pop %v172
  %v174 = vmul.f32 %v173, 0.6931472
  %v175 = vmul.f32 -0.5, %v133
  %v176 = vadd.f32 %v175, 1.0
  %v177 = vmul.f32 %v176, %v133
  %v178 = vand.u32 2147483647, %v133
  %vm179 = vcmp.lt.f32.partialorder %v178, 0.0004427343
  %v180 = vsel %vm179, %v177, %v174
  %v181 = vadd.f32 %v135, 1.0
  %v182 = vlog2.pop %v181
  %v183 = vmul.f32 %v182, 0.6931472
  %v184 = vmul.f32 -0.5, %v135
  %v185 = vadd.f32 %v184, 1.0
  %v186 = vmul.f32 %v185, %v135
  %v187 = vand.u32 2147483647, %v135
  %vm188 = vcmp.lt.f32.partialorder %v187, 0.0004427343
  %v189 = vsel %vm188, %v186, %v183
  %v190 = vadd.f32 %v137, 1.0
  %v191 = vlog2.pop %v190
  %v192 = vmul.f32 %v191, 0.6931472
  %v193 = vmul.f32 -0.5, %v137
  %v194 = vadd.f32 %v193, 1.0
  %v195 = vmul.f32 %v194, %v137
  %v196 = vand.u32 2147483647, %v137
  %vm197 = vcmp.lt.f32.partialorder %v196, 0.0004427343
  %v198 = vsel %vm197, %v195, %v192
  %v199 = vadd.f32 %v139, 1.0
  %v200 = vlog2.pop %v199
  %v201 = vmul.f32 %v200, 0.6931472
  %v202 = vmul.f32 -0.5, %v139
  %v203 = vadd.f32 %v202, 1.0
  %v204 = vmul.f32 %v203, %v139
  %v205 = vand.u32 2147483647, %v139
  %vm206 = vcmp.lt.f32.partialorder %v205, 0.0004427343
  %v207 = vsel %vm206, %v204, %v201
  %v208 = vadd.f32 %v141, 1.0
  %v209 = vlog2.pop %v208
  %v210 = vmul.f32 %v209, 0.6931472
  %v211 = vmul.f32 -0.5, %v141
  %v212 = vadd.f32 %v211, 1.0
  %v213 = vmul.f32 %v212, %v141
  %v214 = vand.u32 2147483647, %v141
  %vm215 = vcmp.lt.f32.partialorder %v214, 0.0004427343
  %v216 = vsel %vm215, %v213, %v210
  %v217 = vadd.f32 %v143, 1.0
  %v218 = vlog2.pop %v217
  %v219 = vmul.f32 %v218, 0.6931472
  %v220 = vmul.f32 -0.5, %v143
  %v221 = vadd.f32 %v220, 1.0
  %v222 = vmul.f32 %v221, %v143
  %v223 = vand.u32 2147483647, %v143
  %vm224 = vcmp.lt.f32.partialorder %v223, 0.0004427343
  %v225 = vsel %vm224, %v222, %v219
  %v226 = vadd.f32 %v145, 1.0
  %v227 = vlog2.pop %v226
  %v228 = vmul.f32 %v227, 0.6931472
  %v229 = vmul.f32 -0.5, %v145
  %v230 = vadd.f32 %v229, 1.0
  %v231 = vmul.f32 %v230, %v145
  %v232 = vand.u32 2147483647, %v145
  %vm233 = vcmp.lt.f32.partialorder %v232, 0.0004427343
  %v234 = vsel %vm233, %v231, %v228
  %v235 = vadd.f32 %v147, 1.0
  %v236 = vlog2.pop %v235
  %v237 = vmul.f32 %v236, 0.6931472
  %v238 = vmul.f32 -0.5, %v147
  %v239 = vadd.f32 %v238, 1.0
  %v240 = vmul.f32 %v239, %v147
  %v241 = vand.u32 2147483647, %v147
  %vm242 = vcmp.lt.f32.partialorder %v241, 0.0004427343
  %v243 = vsel %vm242, %v240, %v237
  %v244 = vadd.f32 %v164, %v180
  %v245 = vadd.f32 %v165, %v189
  %v246 = vadd.f32 %v166, %v198
  %v247 = vadd.f32 %v167, %v207
  %v248 = vadd.f32 %v168, %v216
  %v249 = vadd.f32 %v169, %v225
  %v250 = vadd.f32 %v170, %v234
  %v251 = vadd.f32 %v171, %v243
  %v252 = vadd.f32 %v133, 1.0
  %v253 = vadd.f32 %v135, 1.0
  %v254 = vadd.f32 %v137, 1.0
  %v255 = vadd.f32 %v139, 1.0
  %v256 = vadd.f32 %v141, 1.0
  %v257 = vadd.f32 %v143, 1.0
  %v258 = vadd.f32 %v145, 1.0
  %v259 = vadd.f32 %v147, 1.0
  %v260 = vrcp.pop %v252
  %v261 = vrcp.pop %v253
  %v262 = vrcp.pop %v254
  %v263 = vrcp.pop %v255
  %v264 = vrcp.pop %v256
  %v265 = vrcp.pop %v257
  %v266 = vrcp.pop %v258
  %v267 = vrcp.pop %v259
  %vm268 = vcmp.ge.f32.partialorder %v89, 0.0
  %vm269 = vcmp.ge.f32.partialorder %v90, 0.0
  %vm270 = vcmp.ge.f32.partialorder %v91, 0.0
  %vm271 = vcmp.ge.f32.partialorder %v92, 0.0
  %vm272 = vcmp.ge.f32.partialorder %v93, 0.0
  %vm273 = vcmp.ge.f32.partialorder %v94, 0.0
  %vm274 = vcmp.ge.f32.partialorder %v95, 0.0
  %vm275 = vcmp.ge.f32.partialorder %v96, 0.0
  %vm276 = vcmp.eq.f32.partialorder %v108, 1.0
  %vm277 = vcmp.eq.f32.partialorder %v109, 1.0
  %vm278 = vcmp.eq.f32.partialorder %v110, 1.0
  %vm279 = vcmp.eq.f32.partialorder %v111, 1.0
  %vm280 = vcmp.eq.f32.partialorder %v112, 1.0
  %vm281 = vcmp.eq.f32.partialorder %v113, 1.0
  %vm282 = vcmp.eq.f32.partialorder %v114, 1.0
  %vm283 = vcmp.eq.f32.partialorder %v115, 1.0
  %vm284 = vmxor %vm268, %vm276
  %vm285 = vmxor %vm269, %vm277
  %vm286 = vmxor %vm270, %vm278
  %vm287 = vmxor %vm271, %vm279
  %vm288 = vmxor %vm272, %vm280
  %vm289 = vmxor %vm273, %vm281
  %vm290 = vmxor %vm274, %vm282
  %vm291 = vmxor %vm275, %vm283
  %vm292 = vmxor %vm284, 1
  %vm293 = vmxor %vm285, 1
  %vm294 = vmxor %vm286, 1
  %vm295 = vmxor %vm287, 1
  %vm296 = vmxor %vm288, 1
  %vm297 = vmxor %vm289, 1
  %vm298 = vmxor %vm290, 1
  %vm299 = vmxor %vm291, 1
  %v300 = vmul.f32 %v133, %v260
  %v301 = vmul.f32 %v135, %v261
  %v302 = vmul.f32 %v137, %v262
  %v303 = vmul.f32 %v139, %v263
  %v304 = vmul.f32 %v141, %v264
  %v305 = vmul.f32 %v143, %v265
  %v306 = vmul.f32 %v145, %v266
  %v307 = vmul.f32 %v147, %v267
  %v308 = vsel %vm292, %v300, %v260
  %v309 = vsel %vm293, %v301, %v261
  %v310 = vsel %vm294, %v302, %v262
  %v311 = vsel %vm295, %v303, %v263
  %v312 = vsel %vm296, %v304, %v264
  %v313 = vsel %vm297, %v305, %v265
  %v314 = vsel %vm298, %v306, %v266
  %v315 = vsel %vm299, %v307, %v267
  %v316 = vmul.f32 %v308, %v308
  %v317 = vmul.f32 %v309, %v309
  %v318 = vmul.f32 %v310, %v310
  %v319 = vmul.f32 %v311, %v311
  %v320 = vmul.f32 %v312, %v312
  %v321 = vmul.f32 %v313, %v313
  %v322 = vmul.f32 %v314, %v314
  %v323 = vmul.f32 %v315, %v315
  %v324 = vsel %vm276, 0.25, 0.75
  %v325 = vsel %vm277, 0.25, 0.75
  %v326 = vsel %vm278, 0.25, 0.75
  %v327 = vsel %vm279, 0.25, 0.75
  %v328 = vsel %vm280, 0.25, 0.75
  %v329 = vsel %vm281, 0.25, 0.75
  %v330 = vsel %vm282, 0.25, 0.75
  %v331 = vsel %vm283, 0.25, 0.75
  %v332 = vmul.f32 %v324, %v316
  %v333 = vmul.f32 %v325, %v317
  %v334 = vmul.f32 %v326, %v318
  %v335 = vmul.f32 %v327, %v319
  %v336 = vmul.f32 %v328, %v320
  %v337 = vmul.f32 %v329, %v321
  %v338 = vmul.f32 %v330, %v322
  %v339 = vmul.f32 %v331, %v323
  %v340 = vmul.f32 %v332, %v244
  %v341 = vmul.f32 %v333, %v245
  %v342 = vmul.f32 %v334, %v246
  %v343 = vmul.f32 %v335, %v247
  %v344 = vmul.f32 %v336, %v248
  %v345 = vmul.f32 %v337, %v249
  %v346 = vmul.f32 %v338, %v250
  %v347 = vmul.f32 %v339, %v251
  %v348 = vld [vmem:[#allocation2] sm:$0xff]
  %v349 = vld [vmem:[#allocation2 + $0x8] sm:$0xff]
  %v350 = vadd.f32 %v340, %v342
  %v351 = vadd.f32 %v350, %v344
  %v352 = vadd.f32 %v351, %v346
  %v353 = vadd.f32 %v341, %v343
  %v354 = vadd.f32 %v353, %v345
  %v355 = vadd.f32 %v354, %v347
  %v356 = vadd.f32 %v348, %v352
  %v357 = vadd.f32 %v349, %v355
  %358 = vst [vmem:[#allocation2] sm:$0xff] %v356
  %359 = vst [vmem:[#allocation2 + $0x8] sm:$0xff] %v357
  // Predicated region
  $region14: #{focal_loss.1} parent=0 // pred_check
    %p360 = pneg %p81
  $region15: #{focal_loss.1} parent=0 // pred_check_branch
    %362 = sbr.rel (%p360) target = $region17
  $region16: #{focal_loss.1} parent=0 // pred_region
    %v363 = vld [vmem:[#allocation2] sm:$0xff]
    %v364 = vld [vmem:[#allocation2 + $0x8] sm:$0xff]
    %365 = vst [vmem:[%s2] sm:$0xff] %v363
    %366 = vst [vmem:[%s2 + $0x8] sm:$0xff] %v364
  $region17: #{focal_loss.1} parent=0 // pred_fallthru
    _
  // Predicated region
  $region18: #{focal_loss.1} parent=0 // pred_check
    _
  $region19: #{focal_loss.1} parent=0 // pred_check_branch
    %368 = sbr.rel (0) target = $region21
  $region20: #{focal_loss.1} parent=0 // pred_region
    _
  $region21: #{focal_loss.1} parent=0 // pred_fallthru
    _
  // Predicated region
  $region22: #{focal_loss.1} parent=0 // pred_check
    _
  $region23: #{focal_loss.1} parent=0 // pred_check_branch
    %370 = sbr.rel (0) target = $region25
  $region24: #{focal_loss.1} parent=0 // pred_region
    _
  $region25: #{focal_loss.1} parent=0 // pred_fallthru
    _

</llo_original>
